<compile_context>
chip_gen: v7x
topology: tpu7x:2x2x1
jax: 0.10.0
libtpu: 0.0.40
codegen_flags: <defaults>
</compile_context>

<pallas_src>
import jax
import jax.numpy as jnp
from jax import lax
from jax.experimental import pallas as pl
from jax.experimental.pallas import tpu as pltpu


# torch: masked_fill(~mask, -finfo(dtype).max)  (softmax is computed in f32)
_MAX_NEG_F32 = float(-jnp.finfo(jnp.float32).max)


def _pick_tile(dim: int) -> int:
    """Largest MXU-friendly tile that evenly divides dim (full dim if small)."""
    for t in (256, 128):
        if dim >= t and dim % t == 0:
            return t
    return dim


def _make_fused_attention_kernel(*, scale, num_heads, head_dim, out_features,
                                 causal, has_mask, n_total, m_total, tq, tk):
    h, d = num_heads, head_dim

    def body(q_ref, k_ref, v_ref, mask_ref, w_ref, b_ref, o_ref,
             m_sc, l_sc, acc_sc):
        qi = pl.program_id(1)
        ki = pl.program_id(2)

        @pl.when(ki == 0)
        def _init():
            m_sc[...] = jnp.full_like(m_sc, -jnp.inf)
            l_sc[...] = jnp.zeros_like(l_sc)
            acc_sc[...] = jnp.zeros_like(acc_sc)

        # ---- mask for this (tq, tk) tile, shared across all heads ----------
        if causal:
            rows = qi * tq + lax.broadcasted_iota(jnp.int32, (tq, tk), 0)
            cols = ki * tk + lax.broadcasted_iota(jnp.int32, (tq, tk), 1)
            keep = cols <= rows + (m_total - n_total)
        elif has_mask:
            keep = mask_ref[0] > 0                      # (tq, tk)
        else:
            keep = None

        # ---- online softmax, statically unrolled over heads ----------------
        for hh in range(h):
            lo = hh * d
            qh = q_ref[0, :, lo:lo + d]                 # (tq, d), input dtype
            kh = k_ref[0, :, lo:lo + d]                 # (tk, d)
            vh = v_ref[0, :, lo:lo + d]                 # (tk, d)

            s = jnp.einsum('qd,kd->qk', qh, kh,
                           preferred_element_type=jnp.float32) * scale
            if keep is not None:
                s = jnp.where(keep, s, _MAX_NEG_F32)

            m_prev = m_sc[hh]                           # (tq, 1)
            m_new = jnp.maximum(m_prev, jnp.max(s, axis=-1, keepdims=True))
            alpha = jnp.exp(m_prev - m_new)
            p = jnp.exp(s - m_new)                      # (tq, tk) f32

            l_sc[hh] = alpha * l_sc[hh] + jnp.sum(p, axis=-1, keepdims=True)
            acc_sc[hh] = alpha * acc_sc[hh] + jnp.dot(
                p.astype(vh.dtype), vh, preferred_element_type=jnp.float32)
            m_sc[hh] = m_new

        # ---- last KV step: normalize + fused output projection -------------
        @pl.when(ki == pl.num_programs(2) - 1)
        def _finalize():
            out = jnp.zeros((tq, out_features), jnp.float32) + b_ref[...]
            for hh in range(h):
                inv_l = pl.reciprocal(l_sc[hh], approx=True)   # EUP slot
                norm = acc_sc[hh] * inv_l                       # (tq, d) f32
                w_h = w_ref[hh * d:(hh + 1) * d, :]             # (d, out)
                out = out + jnp.dot(norm.astype(w_h.dtype), w_h,
                                    preferred_element_type=jnp.float32)
            o_ref[0] = out.astype(o_ref.dtype)

    if has_mask:
        def kernel(q_ref, k_ref, v_ref, mask_ref, w_ref, b_ref, o_ref,
                   m_sc, l_sc, acc_sc):
            body(q_ref, k_ref, v_ref, mask_ref, w_ref, b_ref, o_ref,
                 m_sc, l_sc, acc_sc)
    else:
        def kernel(q_ref, k_ref, v_ref, w_ref, b_ref, o_ref,
                   m_sc, l_sc, acc_sc):
            body(q_ref, k_ref, v_ref, None, w_ref, b_ref, o_ref,
                 m_sc, l_sc, acc_sc)
    return kernel


class AttentionBase:
    def __init__(self, features, *, head_features, num_heads, out_features=None,
                 key=None):
        self.scale = head_features ** (-0.5)
        self.num_heads = num_heads
        self.head_features = head_features
        self.mid_features = head_features * num_heads
        self.out_features = features if out_features is None else out_features

        if key is None:
            key = jax.random.PRNGKey(0)
        kw, kb = jax.random.split(key)
        bound = 1.0 / (self.mid_features ** 0.5)
        # Stored transposed: [mid_features, out_features] so kernel does x@W+b.
        self.w_out = jax.random.uniform(
            kw, (self.mid_features, self.out_features), jnp.float32, -bound, bound)
        self.b_out = jax.random.uniform(
            kb, (1, self.out_features), jnp.float32, -bound, bound)

    def __call__(self, q, k, v, mask=None, is_causal=False):
        b, n, f = q.shape
        m = k.shape[1]
        h, d = self.num_heads, self.head_features
        assert f == h * d, "feature dim must equal num_heads * head_features"
        out_f = self.out_features

        tq = _pick_tile(n)
        tk = _pick_tile(m)
        grid = (b, n // tq, m // tk)

        has_mask = mask is not None
        causal = bool(is_causal) and not has_mask   # torch: mask wins over causal

        kernel = _make_fused_attention_kernel(
            scale=self.scale, num_heads=h, head_dim=d, out_features=out_f,
            causal=causal, has_mask=has_mask, n_total=n, m_total=m, tq=tq, tk=tk)

        in_specs = [
            pl.BlockSpec((1, tq, h * d), lambda bi, qi, ki: (bi, qi, 0)),
            pl.BlockSpec((1, tk, h * d), lambda bi, qi, ki: (bi, ki, 0)),
            pl.BlockSpec((1, tk, h * d), lambda bi, qi, ki: (bi, ki, 0)),
        ]
        inputs = [q, k, v]
        if has_mask:
            mk = jnp.asarray(mask)
            if mk.ndim == 2:                                   # (n, m) -> (b, n, m)
                mk = jnp.broadcast_to(mk[None], (b, n, m))
            # One copy per batch (heads deduplicated), small integer dtype.
            inputs.append(mk.astype(jnp.int32))
            in_specs.append(
                pl.BlockSpec((1, tq, tk), lambda bi, qi, ki: (bi, qi, ki)))
        in_specs += [
            pl.BlockSpec((self.mid_features, out_f), lambda bi, qi, ki: (0, 0)),
            pl.BlockSpec((1, out_f), lambda bi, qi, ki: (0, 0)),
        ]
        inputs += [self.w_out, self.b_out]

        out = pl.pallas_call(
            kernel,
            out_shape=jax.ShapeDtypeStruct((b, n, out_f), q.dtype),
            grid_spec=pltpu.PrefetchScalarGridSpec(
                num_scalar_prefetch=0,
                grid=grid,
                in_specs=in_specs,
                out_specs=pl.BlockSpec((1, tq, out_f),
                                       lambda bi, qi, ki: (bi, qi, 0)),
                scratch_shapes=[
                    pltpu.VMEM((h, tq, 1), jnp.float32),   # running max
                    pltpu.VMEM((h, tq, 1), jnp.float32),   # running sum
                    pltpu.VMEM((h, tq, d), jnp.float32),   # output accumulator
                ],
            ),
            compiler_params=pltpu.CompilerParams(
                dimension_semantics=("parallel", "parallel", "arbitrary"),
                vmem_limit_bytes=64 * 1024 * 1024,
            ),
        )(*inputs)
        return out


# ----------------------------------------------------------------------------
# Pure-JAX reference (sanity check only)
# ----------------------------------------------------------------------------
def _reference(module, q, k, v, mask=None, is_causal=False):
    b, n, _ = q.shape
    m = k.shape[1]
    h, d = module.num_heads, module.head_features
    qh = q.reshape(b, n, h, d).transpose(0, 2, 1, 3).astype(jnp.float32)
    kh = k.reshape(b, m, h, d).transpose(0, 2, 1, 3).astype(jnp.float32)
    vh = v.reshape(b, m, h, d).transpose(0, 2, 1, 3).astype(jnp.float32)
    sim = jnp.einsum('bhnd,bhmd->bhnm', qh, kh) * module.scale
    if mask is None and is_causal:
        rows = jnp.arange(n)[:, None]
        cols = jnp.arange(m)[None, :]
        mask = jnp.broadcast_to((cols <= rows + (m - n))[None], (b, n, m))
    if mask is not None:
        mk = jnp.asarray(mask)
        if mk.ndim == 2:
            mk = jnp.broadcast_to(mk[None], (b, n, m))
        sim = jnp.where(mk[:, None].astype(bool), sim, _MAX_NEG_F32)
    attn = jax.nn.softmax(sim, axis=-1)
    out = jnp.einsum('bhnm,bhmd->bhnd', attn, vh)
    out = out.transpose(0, 2, 1, 3).reshape(b, n, h * d)
    return out @ module.w_out + module.b_out


# ----------------------------------------------------------------------------
if __name__ == "__main__":
    # TODO(synk): torch's CUDA sdp_kernel/flash dispatch config has no TPU
    # equivalent; the math path (softmax attention + Linear) is implemented.
    key = jax.random.PRNGKey(0)
    kq, kk, kv, kp, km = jax.random.split(key, 5)

    B, N, H, D = 2, 8, 2, 16            # features = H*D = 32
    features = H * D

    q = jax.random.normal(kq, (B, N, features), jnp.float32)
    k = jax.random.normal(kk, (B, N, features), jnp.float32)
    v = jax.random.normal(kv, (B, N, features), jnp.float32)

    attn = AttentionBase(features, head_features=D, num_heads=H,
                         out_features=features, key=kp)

    out = jax.block_until_ready(attn(q, k, v))                      # no mask
    out_c = jax.block_until_ready(attn(q, k, v, is_causal=True))    # causal
    user_mask = jax.random.bernoulli(km, 0.7, (B, N, N))
    out_m = jax.block_until_ready(attn(q, k, v, mask=user_mask))    # user mask

    ref = _reference(attn, q, k, v)
    ref_c = _reference(attn, q, k, v, is_causal=True)
    ref_m = _reference(attn, q, k, v, mask=user_mask)

    # Slightly loose tolerance: the kernel normalizes with the EUP approximate
    # reciprocal (pl.reciprocal(..., approx=True)).
    assert jnp.allclose(out, ref, atol=1e-2, rtol=1e-2), float(jnp.max(jnp.abs(out - ref)))
    assert jnp.allclose(out_c, ref_c, atol=1e-2, rtol=1e-2), float(jnp.max(jnp.abs(out_c - ref_c)))
    assert jnp.allclose(out_m, ref_m, atol=1e-2, rtol=1e-2), float(jnp.max(jnp.abs(out_m - ref_m)))

    print("KERNEL_OK")
</pallas_src>

<mosaic_0001>
module attributes {stable_mosaic.version = 11 : i64} {
  func.func @kernel(%arg0: i32, %arg1: i32, %arg2: i32, %arg3: memref<1x8x32xf32, #tpu.memory_space<vmem>>, %arg4: memref<1x8x32xf32, #tpu.memory_space<vmem>>, %arg5: memref<1x8x32xf32, #tpu.memory_space<vmem>>, %arg6: memref<32x32xf32, #tpu.memory_space<vmem>>, %arg7: memref<1x32xf32, #tpu.memory_space<vmem>>, %arg8: memref<1x8x32xf32, #tpu.memory_space<vmem>>, %arg9: memref<2x8x1xf32, #tpu.memory_space<vmem>>, %arg10: memref<2x8x1xf32, #tpu.memory_space<vmem>>, %arg11: memref<2x8x16xf32, #tpu.memory_space<vmem>>) attributes {dimension_semantics = [#tpu.dimension_semantics<parallel>, #tpu.dimension_semantics<parallel>, #tpu.dimension_semantics<arbitrary>], iteration_bounds = array<i64: 2, 1, 1>, scalar_prefetch = 0 : i64, scratch_operands = 3 : i64, tpu.core_type = #tpu.core_type<tc>, window_params = [{transform_indices = @transform_0, window_bounds = array<i64: 1, 8, 32>}, {transform_indices = @transform_1, window_bounds = array<i64: 1, 8, 32>}, {transform_indices = @transform_2, window_bounds = array<i64: 1, 8, 32>}, {pipeline_mode = #tpu.pipeline_mode<synchronous>, transform_indices = @transform_3, window_bounds = array<i64: 32, 32>}, {pipeline_mode = #tpu.pipeline_mode<synchronous>, transform_indices = @transform_4, window_bounds = array<i64: 1, 32>}, {transform_indices = @transform_5, window_bounds = array<i64: 1, 8, 32>}]} {
    %c0_i32 = arith.constant 0 : i32
    %0 = arith.cmpi eq, %arg2, %c0_i32 : i32
    %1 = arith.extui %0 : i1 to i32
    %c0_i32_0 = arith.constant 0 : i32
    %2 = arith.cmpi ne, %1, %c0_i32_0 : i32
    scf.if %2 {
      %cst_63 = arith.constant 0xFF800000 : f32
      %86 = vector.broadcast %cst_63 : f32 to vector<2x8x1xf32>
      %c0_64 = arith.constant 0 : index
      %c0_65 = arith.constant 0 : index
      %c0_66 = arith.constant 0 : index
      %87 = vector.load %arg9[%c0_64, %c0_65, %c0_66] : memref<2x8x1xf32, #tpu.memory_space<vmem>>, vector<2x8x1xf32>
      tpu.vector_store %arg9[%c0_64, %c0_65, %c0_66], %86 {strides = array<i32>} : memref<2x8x1xf32, #tpu.memory_space<vmem>>, vector<2x8x1xf32>,
      %cst_67 = arith.constant 0.000000e+00 : f32
      %88 = vector.broadcast %cst_67 : f32 to vector<2x8x1xf32>
      %c0_68 = arith.constant 0 : index
      %c0_69 = arith.constant 0 : index
      %c0_70 = arith.constant 0 : index
      %89 = vector.load %arg10[%c0_68, %c0_69, %c0_70] : memref<2x8x1xf32, #tpu.memory_space<vmem>>, vector<2x8x1xf32>
      tpu.vector_store %arg10[%c0_68, %c0_69, %c0_70], %88 {strides = array<i32>} : memref<2x8x1xf32, #tpu.memory_space<vmem>>, vector<2x8x1xf32>,
      %cst_71 = arith.constant 0.000000e+00 : f32
      %90 = vector.broadcast %cst_71 : f32 to vector<2x8x16xf32>
      %c0_72 = arith.constant 0 : index
      %c0_73 = arith.constant 0 : index
      %c0_74 = arith.constant 0 : index
      %91 = vector.load %arg11[%c0_72, %c0_73, %c0_74] : memref<2x8x16xf32, #tpu.memory_space<vmem>>, vector<2x8x16xf32>
      tpu.vector_store %arg11[%c0_72, %c0_73, %c0_74], %90 {strides = array<i32>} : memref<2x8x16xf32, #tpu.memory_space<vmem>>, vector<2x8x16xf32>,
    } else {
    }
    %c0 = arith.constant 0 : index
    %c0_1 = arith.constant 0 : index
    %c0_2 = arith.constant 0 : index
    %3 = vector.load %arg3[%c0, %c0_1, %c0_2] : memref<1x8x32xf32, #tpu.memory_space<vmem>>, vector<1x8x16xf32>
    %4 = vector.shape_cast %3 : vector<1x8x16xf32> to vector<8x16xf32>
    %c0_3 = arith.constant 0 : index
    %c0_4 = arith.constant 0 : index
    %c0_5 = arith.constant 0 : index
    %5 = vector.load %arg4[%c0_3, %c0_4, %c0_5] : memref<1x8x32xf32, #tpu.memory_space<vmem>>, vector<1x8x16xf32>
    %6 = vector.shape_cast %5 : vector<1x8x16xf32> to vector<8x16xf32>
    %c0_6 = arith.constant 0 : index
    %c0_7 = arith.constant 0 : index
    %c0_8 = arith.constant 0 : index
    %7 = vector.load %arg5[%c0_6, %c0_7, %c0_8] : memref<1x8x32xf32, #tpu.memory_space<vmem>>, vector<1x8x16xf32>
    %8 = vector.shape_cast %7 : vector<1x8x16xf32> to vector<8x16xf32>
    "tpu.trace_start"() <{level = 10 : i32, message = "qd,kd->qk"}> : () -> ()
    %cst = arith.constant dense<0.000000e+00> : vector<8x8xf32>
    %9 = tpu.matmul %4, %6, %cst {dimension_numbers = #tpu.dot_dimension_numbers<[1], [1], [0], [0], [0, 0, 1, 0], [], []>} : vector<8x16xf32>, vector<8x16xf32>, vector<8x8xf32> -> vector<8x8xf32>
    "tpu.trace_stop"() : () -> ()
    %cst_9 = arith.constant 2.500000e-01 : f32
    %10 = vector.broadcast %cst_9 : f32 to vector<8x8xf32>
    %11 = arith.mulf %9, %10 : vector<8x8xf32>
    %c0_10 = arith.constant 0 : index
    %c0_11 = arith.constant 0 : index
    %c0_12 = arith.constant 0 : index
    %12 = vector.load %arg9[%c0_10, %c0_11, %c0_12] : memref<2x8x1xf32, #tpu.memory_space<vmem>>, vector<1x8x1xf32>
    %13 = vector.shape_cast %12 : vector<1x8x1xf32> to vector<8x1xf32>
    %cst_13 = arith.constant dense<0xFF800000> : vector<8xf32>
    %14 = vector.multi_reduction <maximumf>, %11, %cst_13 [1] : vector<8x8xf32> to vector<8xf32>
    %15 = vector.shape_cast %14 : vector<8xf32> to vector<8x1xf32>
    %16 = arith.maximumf %13, %15 : vector<8x1xf32>
    %17 = arith.subf %13, %16 : vector<8x1xf32>
    %18 = math.exp %17 : vector<8x1xf32>
    %19 = vector.broadcast %16 : vector<8x1xf32> to vector<8x8xf32>
    %20 = arith.subf %11, %19 : vector<8x8xf32>
    %21 = math.exp %20 : vector<8x8xf32>
    %c0_14 = arith.constant 0 : index
    %c0_15 = arith.constant 0 : index
    %c0_16 = arith.constant 0 : index
    %22 = vector.load %arg10[%c0_14, %c0_15, %c0_16] : memref<2x8x1xf32, #tpu.memory_space<vmem>>, vector<1x8x1xf32>
    %23 = vector.shape_cast %22 : vector<1x8x1xf32> to vector<8x1xf32>
    %24 = arith.mulf %18, %23 : vector<8x1xf32>
    %cst_17 = arith.constant dense<0.000000e+00> : vector<8xf32>
    %25 = vector.multi_reduction <add>, %21, %cst_17 [1] : vector<8x8xf32> to vector<8xf32>
    %26 = vector.shape_cast %25 : vector<8xf32> to vector<8x1xf32>
    %27 = arith.addf %24, %26 : vector<8x1xf32>
    %c0_18 = arith.constant 0 : index
    %c0_19 = arith.constant 0 : index
    %c0_20 = arith.constant 0 : index
    %28 = vector.load %arg10[%c0_18, %c0_19, %c0_20] : memref<2x8x1xf32, #tpu.memory_space<vmem>>, vector<1x8x1xf32>
    %29 = vector.shape_cast %28 : vector<1x8x1xf32> to vector<8x1xf32>
    %30 = vector.shape_cast %27 : vector<8x1xf32> to vector<1x8x1xf32>
    tpu.vector_store %arg10[%c0_18, %c0_19, %c0_20], %30 {strides = array<i32>} : memref<2x8x1xf32, #tpu.memory_space<vmem>>, vector<1x8x1xf32>,
    %c0_21 = arith.constant 0 : index
    %c0_22 = arith.constant 0 : index
    %c0_23 = arith.constant 0 : index
    %31 = vector.load %arg11[%c0_21, %c0_22, %c0_23] : memref<2x8x16xf32, #tpu.memory_space<vmem>>, vector<1x8x16xf32>
    %32 = vector.shape_cast %31 : vector<1x8x16xf32> to vector<8x16xf32>
    %33 = vector.broadcast %18 : vector<8x1xf32> to vector<8x16xf32>
    %34 = arith.mulf %33, %32 : vector<8x16xf32>
    %cst_24 = arith.constant dense<0.000000e+00> : vector<8x16xf32>
    %35 = tpu.matmul %21, %8, %cst_24 {dimension_numbers = #tpu.dot_dimension_numbers<[1], [0], [0], [1], [0, 0, 1, 1], [], []>} : vector<8x8xf32>, vector<8x16xf32>, vector<8x16xf32> -> vector<8x16xf32>
    %36 = arith.addf %34, %35 : vector<8x16xf32>
    %c0_25 = arith.constant 0 : index
    %c0_26 = arith.constant 0 : index
    %c0_27 = arith.constant 0 : index
    %37 = vector.load %arg11[%c0_25, %c0_26, %c0_27] : memref<2x8x16xf32, #tpu.memory_space<vmem>>, vector<1x8x16xf32>
    %38 = vector.shape_cast %37 : vector<1x8x16xf32> to vector<8x16xf32>
    %39 = vector.shape_cast %36 : vector<8x16xf32> to vector<1x8x16xf32>
    tpu.vector_store %arg11[%c0_25, %c0_26, %c0_27], %39 {strides = array<i32>} : memref<2x8x16xf32, #tpu.memory_space<vmem>>, vector<1x8x16xf32>,
    %c0_28 = arith.constant 0 : index
    %c0_29 = arith.constant 0 : index
    %c0_30 = arith.constant 0 : index
    %40 = vector.load %arg9[%c0_28, %c0_29, %c0_30] : memref<2x8x1xf32, #tpu.memory_space<vmem>>, vector<1x8x1xf32>
    %41 = vector.shape_cast %40 : vector<1x8x1xf32> to vector<8x1xf32>
    %42 = vector.shape_cast %16 : vector<8x1xf32> to vector<1x8x1xf32>
    tpu.vector_store %arg9[%c0_28, %c0_29, %c0_30], %42 {strides = array<i32>} : memref<2x8x1xf32, #tpu.memory_space<vmem>>, vector<1x8x1xf32>,
    %c0_31 = arith.constant 0 : index
    %c0_32 = arith.constant 0 : index
    %c16 = arith.constant 16 : index
    %43 = vector.load %arg3[%c0_31, %c0_32, %c16] : memref<1x8x32xf32, #tpu.memory_space<vmem>>, vector<1x8x16xf32>
    %44 = vector.shape_cast %43 : vector<1x8x16xf32> to vector<8x16xf32>
    %c0_33 = arith.constant 0 : index
    %c0_34 = arith.constant 0 : index
    %c16_35 = arith.constant 16 : index
    %45 = vector.load %arg4[%c0_33, %c0_34, %c16_35] : memref<1x8x32xf32, #tpu.memory_space<vmem>>, vector<1x8x16xf32>
    %46 = vector.shape_cast %45 : vector<1x8x16xf32> to vector<8x16xf32>
    %c0_36 = arith.constant 0 : index
    %c0_37 = arith.constant 0 : index
    %c16_38 = arith.constant 16 : index
    %47 = vector.load %arg5[%c0_36, %c0_37, %c16_38] : memref<1x8x32xf32, #tpu.memory_space<vmem>>, vector<1x8x16xf32>
    %48 = vector.shape_cast %47 : vector<1x8x16xf32> to vector<8x16xf32>
    "tpu.trace_start"() <{level = 10 : i32, message = "qd,kd->qk"}> : () -> ()
    %cst_39 = arith.constant dense<0.000000e+00> : vector<8x8xf32>
    %49 = tpu.matmul %44, %46, %cst_39 {dimension_numbers = #tpu.dot_dimension_numbers<[1], [1], [0], [0], [0, 0, 1, 0], [], []>} : vector<8x16xf32>, vector<8x16xf32>, vector<8x8xf32> -> vector<8x8xf32>
    "tpu.trace_stop"() : () -> ()
    %cst_40 = arith.constant 2.500000e-01 : f32
    %50 = vector.broadcast %cst_40 : f32 to vector<8x8xf32>
    %51 = arith.mulf %49, %50 : vector<8x8xf32>
    %c1 = arith.constant 1 : index
    %c0_41 = arith.constant 0 : index
    %c0_42 = arith.constant 0 : index
    %52 = vector.load %arg9[%c1, %c0_41, %c0_42] : memref<2x8x1xf32, #tpu.memory_space<vmem>>, vector<1x8x1xf32>
    %53 = vector.shape_cast %52 : vector<1x8x1xf32> to vector<8x1xf32>
    %cst_43 = arith.constant dense<0xFF800000> : vector<8xf32>
    %54 = vector.multi_reduction <maximumf>, %51, %cst_43 [1] : vector<8x8xf32> to vector<8xf32>
    %55 = vector.shape_cast %54 : vector<8xf32> to vector<8x1xf32>
    %56 = arith.maximumf %53, %55 : vector<8x1xf32>
    %57 = arith.subf %53, %56 : vector<8x1xf32>
    %58 = math.exp %57 : vector<8x1xf32>
    %59 = vector.broadcast %56 : vector<8x1xf32> to vector<8x8xf32>
    %60 = arith.subf %51, %59 : vector<8x8xf32>
    %61 = math.exp %60 : vector<8x8xf32>
    %c1_44 = arith.constant 1 : index
    %c0_45 = arith.constant 0 : index
    %c0_46 = arith.constant 0 : index
    %62 = vector.load %arg10[%c1_44, %c0_45, %c0_46] : memref<2x8x1xf32, #tpu.memory_space<vmem>>, vector<1x8x1xf32>
    %63 = vector.shape_cast %62 : vector<1x8x1xf32> to vector<8x1xf32>
    %64 = arith.mulf %58, %63 : vector<8x1xf32>
    %cst_47 = arith.constant dense<0.000000e+00> : vector<8xf32>
    %65 = vector.multi_reduction <add>, %61, %cst_47 [1] : vector<8x8xf32> to vector<8xf32>
    %66 = vector.shape_cast %65 : vector<8xf32> to vector<8x1xf32>
    %67 = arith.addf %64, %66 : vector<8x1xf32>
    %c1_48 = arith.constant 1 : index
    %c0_49 = arith.constant 0 : index
    %c0_50 = arith.constant 0 : index
    %68 = vector.load %arg10[%c1_48, %c0_49, %c0_50] : memref<2x8x1xf32, #tpu.memory_space<vmem>>, vector<1x8x1xf32>
    %69 = vector.shape_cast %68 : vector<1x8x1xf32> to vector<8x1xf32>
    %70 = vector.shape_cast %67 : vector<8x1xf32> to vector<1x8x1xf32>
    tpu.vector_store %arg10[%c1_48, %c0_49, %c0_50], %70 {strides = array<i32>} : memref<2x8x1xf32, #tpu.memory_space<vmem>>, vector<1x8x1xf32>,
    %c1_51 = arith.constant 1 : index
    %c0_52 = arith.constant 0 : index
    %c0_53 = arith.constant 0 : index
    %71 = vector.load %arg11[%c1_51, %c0_52, %c0_53] : memref<2x8x16xf32, #tpu.memory_space<vmem>>, vector<1x8x16xf32>
    %72 = vector.shape_cast %71 : vector<1x8x16xf32> to vector<8x16xf32>
    %73 = vector.broadcast %58 : vector<8x1xf32> to vector<8x16xf32>
    %74 = arith.mulf %73, %72 : vector<8x16xf32>
    %cst_54 = arith.constant dense<0.000000e+00> : vector<8x16xf32>
    %75 = tpu.matmul %61, %48, %cst_54 {dimension_numbers = #tpu.dot_dimension_numbers<[1], [0], [0], [1], [0, 0, 1, 1], [], []>} : vector<8x8xf32>, vector<8x16xf32>, vector<8x16xf32> -> vector<8x16xf32>
    %76 = arith.addf %74, %75 : vector<8x16xf32>
    %c1_55 = arith.constant 1 : index
    %c0_56 = arith.constant 0 : index
    %c0_57 = arith.constant 0 : index
    %77 = vector.load %arg11[%c1_55, %c0_56, %c0_57] : memref<2x8x16xf32, #tpu.memory_space<vmem>>, vector<1x8x16xf32>
    %78 = vector.shape_cast %77 : vector<1x8x16xf32> to vector<8x16xf32>
    %79 = vector.shape_cast %76 : vector<8x16xf32> to vector<1x8x16xf32>
    tpu.vector_store %arg11[%c1_55, %c0_56, %c0_57], %79 {strides = array<i32>} : memref<2x8x16xf32, #tpu.memory_space<vmem>>, vector<1x8x16xf32>,
    %c1_58 = arith.constant 1 : index
    %c0_59 = arith.constant 0 : index
    %c0_60 = arith.constant 0 : index
    %80 = vector.load %arg9[%c1_58, %c0_59, %c0_60] : memref<2x8x1xf32, #tpu.memory_space<vmem>>, vector<1x8x1xf32>
    %81 = vector.shape_cast %80 : vector<1x8x1xf32> to vector<8x1xf32>
    %82 = vector.shape_cast %56 : vector<8x1xf32> to vector<1x8x1xf32>
    tpu.vector_store %arg9[%c1_58, %c0_59, %c0_60], %82 {strides = array<i32>} : memref<2x8x1xf32, #tpu.memory_space<vmem>>, vector<1x8x1xf32>,
    %c0_i32_61 = arith.constant 0 : i32
    %83 = arith.cmpi eq, %arg2, %c0_i32_61 : i32
    %84 = arith.extui %83 : i1 to i32
    %c0_i32_62 = arith.constant 0 : i32
    %85 = arith.cmpi ne, %84, %c0_i32_62 : i32
    scf.if %85 {
      %cst_63 = arith.constant 0.000000e+00 : f32
      %86 = vector.broadcast %cst_63 : f32 to vector<8x32xf32>
      %c0_64 = arith.constant 0 : index
      %c0_65 = arith.constant 0 : index
      %87 = vector.load %arg7[%c0_64, %c0_65] : memref<1x32xf32, #tpu.memory_space<vmem>>, vector<1x32xf32>
      %88 = vector.broadcast %87 : vector<1x32xf32> to vector<8x32xf32>
      %89 = arith.addf %86, %88 : vector<8x32xf32>
      %c0_66 = arith.constant 0 : index
      %c0_67 = arith.constant 0 : index
      %c0_68 = arith.constant 0 : index
      %90 = vector.load %arg10[%c0_66, %c0_67, %c0_68] : memref<2x8x1xf32, #tpu.memory_space<vmem>>, vector<1x8x1xf32>
      %91 = vector.shape_cast %90 : vector<1x8x1xf32> to vector<8x1xf32>
      %92 = tpu.reciprocal %91 {approx = true} : vector<8x1xf32> -> vector<8x1xf32>
      %c0_69 = arith.constant 0 : index
      %c0_70 = arith.constant 0 : index
      %c0_71 = arith.constant 0 : index
      %93 = vector.load %arg11[%c0_69, %c0_70, %c0_71] : memref<2x8x16xf32, #tpu.memory_space<vmem>>, vector<1x8x16xf32>
      %94 = vector.shape_cast %93 : vector<1x8x16xf32> to vector<8x16xf32>
      %95 = vector.broadcast %92 : vector<8x1xf32> to vector<8x16xf32>
      %96 = arith.mulf %94, %95 : vector<8x16xf32>
      %c0_72 = arith.constant 0 : index
      %c0_73 = arith.constant 0 : index
      %97 = vector.load %arg6[%c0_72, %c0_73] : memref<32x32xf32, #tpu.memory_space<vmem>>, vector<16x32xf32>
      %cst_74 = arith.constant dense<0.000000e+00> : vector<8x32xf32>
      %98 = tpu.matmul %96, %97, %cst_74 {dimension_numbers = #tpu.dot_dimension_numbers<[1], [0], [0], [1], [0, 0, 1, 1], [], []>} : vector<8x16xf32>, vector<16x32xf32>, vector<8x32xf32> -> vector<8x32xf32>
      %99 = arith.addf %89, %98 : vector<8x32xf32>
      %c1_75 = arith.constant 1 : index
      %c0_76 = arith.constant 0 : index
      %c0_77 = arith.constant 0 : index
      %100 = vector.load %arg10[%c1_75, %c0_76, %c0_77] : memref<2x8x1xf32, #tpu.memory_space<vmem>>, vector<1x8x1xf32>
      %101 = vector.shape_cast %100 : vector<1x8x1xf32> to vector<8x1xf32>
      %102 = tpu.reciprocal %101 {approx = true} : vector<8x1xf32> -> vector<8x1xf32>
      %c1_78 = arith.constant 1 : index
      %c0_79 = arith.constant 0 : index
      %c0_80 = arith.constant 0 : index
      %103 = vector.load %arg11[%c1_78, %c0_79, %c0_80] : memref<2x8x16xf32, #tpu.memory_space<vmem>>, vector<1x8x16xf32>
      %104 = vector.shape_cast %103 : vector<1x8x16xf32> to vector<8x16xf32>
      %105 = vector.broadcast %102 : vector<8x1xf32> to vector<8x16xf32>
      %106 = arith.mulf %104, %105 : vector<8x16xf32>
      %c16_81 = arith.constant 16 : index
      %c0_82 = arith.constant 0 : index
      %107 = vector.load %arg6[%c16_81, %c0_82] : memref<32x32xf32, #tpu.memory_space<vmem>>, vector<16x32xf32>
      %cst_83 = arith.constant dense<0.000000e+00> : vector<8x32xf32>
      %108 = tpu.matmul %106, %107, %cst_83 {dimension_numbers = #tpu.dot_dimension_numbers<[1], [0], [0], [1], [0, 0, 1, 1], [], []>} : vector<8x16xf32>, vector<16x32xf32>, vector<8x32xf32> -> vector<8x32xf32>
      %109 = arith.addf %99, %108 : vector<8x32xf32>
      %c0_84 = arith.constant 0 : index
      %c0_85 = arith.constant 0 : index
      %c0_86 = arith.constant 0 : index
      %110 = vector.load %arg8[%c0_84, %c0_85, %c0_86] : memref<1x8x32xf32, #tpu.memory_space<vmem>>, vector<1x8x32xf32>
      %111 = vector.shape_cast %110 : vector<1x8x32xf32> to vector<8x32xf32>
      %112 = vector.shape_cast %109 : vector<8x32xf32> to vector<1x8x32xf32>
      tpu.vector_store %arg8[%c0_84, %c0_85, %c0_86], %112 {strides = array<i32>} : memref<1x8x32xf32, #tpu.memory_space<vmem>>, vector<1x8x32xf32>,
    } else {
    }
    return
  }
  func.func @transform_0(%arg0: i32, %arg1: i32, %arg2: i32) -> (i32, i32, i32) {
    %c0_i32 = arith.constant 0 : i32
    %c0_i32_0 = arith.constant 0 : i32
    return %arg0, %arg1, %c0_i32 : i32, i32, i32
  }
  func.func @transform_1(%arg0: i32, %arg1: i32, %arg2: i32) -> (i32, i32, i32) {
    %c0_i32 = arith.constant 0 : i32
    %c0_i32_0 = arith.constant 0 : i32
    return %arg0, %arg2, %c0_i32 : i32, i32, i32
  }
  func.func @transform_2(%arg0: i32, %arg1: i32, %arg2: i32) -> (i32, i32, i32) {
    %c0_i32 = arith.constant 0 : i32
    %c0_i32_0 = arith.constant 0 : i32
    return %arg0, %arg2, %c0_i32 : i32, i32, i32
  }
  func.func @transform_3(%arg0: i32, %arg1: i32, %arg2: i32) -> (i32, i32) {
    %c0_i32 = arith.constant 0 : i32
    %c0_i32_0 = arith.constant 0 : i32
    %c0_i32_1 = arith.constant 0 : i32
    return %c0_i32, %c0_i32_0 : i32, i32
  }
  func.func @transform_4(%arg0: i32, %arg1: i32, %arg2: i32) -> (i32, i32) {
    %c0_i32 = arith.constant 0 : i32
    %c0_i32_0 = arith.constant 0 : i32
    %c0_i32_1 = arith.constant 0 : i32
    return %c0_i32, %c0_i32_0 : i32, i32
  }
  func.func @transform_5(%arg0: i32, %arg1: i32, %arg2: i32) -> (i32, i32, i32) {
    %c0_i32 = arith.constant 0 : i32
    %c0_i32_0 = arith.constant 0 : i32
    return %arg0, %arg1, %c0_i32 : i32, i32, i32
  }
}

</mosaic_0001>

<llo_original>
// kernel: tpu_custom_call.1
$region0: #{tpu_custom_call.1}
  #allocation0 [shape = 'u32[]', space=smem, size = 0x4, offset = 0x4, fixed_abs, tag = 'smem constant byte address 0x4 - core index']
  #allocation1 [shape = 'u32[144,128]{1,0:T(1,128)}', space=vmem, size = 0x12000, scoped, tag = 'internal scratch']
  #allocation2 [shape = 'f32[2,8,1]{2,1,0:T(8,128)}', space=vmem, size = 0x2000, scoped, tag = 'scratch operand']
  #allocation3 [shape = 'f32[2,8,1]{2,1,0:T(8,128)}', space=vmem, size = 0x2000, scoped, tag = 'scratch operand']
  #allocation4 [shape = 'f32[2,8,16]{2,1,0:T(8,128)}', space=vmem, size = 0x2000, scoped, tag = 'scratch operand']
  %s0 = inlined_call_operand.hbm [shape: f32[2,8,32], index: 0, kind: input, shape index: {}]
  %s1 = inlined_call_operand.hbm [shape: f32[2,8,32], index: 1, kind: input, shape index: {}]
  %s2 = inlined_call_operand.hbm [shape: f32[2,8,32], index: 2, kind: input, shape index: {}]
  %s3 = inlined_call_operand.hbm [shape: f32[32,32], index: 3, kind: input, shape index: {}]
  %s4 = inlined_call_operand.hbm [shape: f32[1,32], index: 4, kind: input, shape index: {}]
  %s5 = inlined_call_operand.hbm [shape: f32[2,8,32], index: 5, kind: output, shape index: {}]
  %s6 = sld [smem:[#allocation0]]
  $region81: #{tpu_custom_call.1} parent=0
    _
  %s8 = ssub.s32 1, %s6
  %s9 = scalar_select 0, %s8, %s6
  $region1: #{tpu_custom_call.1} parent=0
    #allocation5 [shape = 'u8[8192]{0}', space=vmem, size = 0x2000, scoped, tag = 'input window, operand 0']
    #allocation6 [shape = 's32[2]{0}', space=sflag, size = 0x8, scoped, tag = 'scoped memory for tpu_custom_call.1']
    #allocation7 [shape = 's32[2]{0}', space=sflag, size = 0x8, scoped, tag = 'scoped memory for tpu_custom_call.1']
    #allocation8 [shape = 'u8[8192]{0}', space=vmem, size = 0x2000, scoped, tag = 'input window, operand 1']
    #allocation9 [shape = 's32[2]{0}', space=sflag, size = 0x8, scoped, tag = 'scoped memory for tpu_custom_call.1']
    #allocation10 [shape = 'u8[8192]{0}', space=vmem, size = 0x2000, scoped, tag = 'input window, operand 2']
    #allocation11 [shape = 'u8[16384]{0}', space=vmem, size = 0x4000, scoped, tag = 'input window, operand 3, single buffered']
    #allocation12 [shape = 's32[1]{0}', space=sflag, size = 0x4, scoped, tag = 'scoped memory for tpu_custom_call.1']
    #allocation13 [shape = 'u8[512]{0}', space=vmem, size = 0x400, scoped, tag = 'input window, operand 4, single buffered']
    #allocation14 [shape = 'u8[8192]{0}', space=vmem, size = 0x2000, scoped, tag = 'output window, operand 0']
    %10 = vsyncpa [#allocation6], 0
    %s11 = scalar_lea.sflag [#allocation6], 1
    %12 = vsyncpa %s11, 0
    %13 = vsyncpa [#allocation9], 0
    %s14 = scalar_lea.sflag [#allocation9], 1
    %15 = vsyncpa %s14, 0
    %16 = vsyncpa [#allocation12], 0
    %17 = vsyncpa [#allocation7], 0
    %s18 = scalar_lea.sflag [#allocation7], 1
    %19 = vsyncpa %s18, 0
    loop: start=0, step=1, limit=4
    $region2: #{tpu_custom_call.1} parent=1 // loop_pre_header
      _
    $region3: #{tpu_custom_call.1} parent=1 // loop_header
      %s21 = sphi 0, %s25
      %p22 = scmp.ge.s32.totalorder %s21, 4
      %s28 = sphi 0, %s47
      %s29 = sphi 0, %s43
      %s30 = sphi 0, %s39
      %s31 = sphi 0, %s28
      %s32 = sphi 0, %s29
      %s33 = sphi 0, %s30
      %s34 = sphi 0, %s31
      %s35 = sphi 0, %s32
      %s36 = sphi 0, %s33
      %s52 = sphi 0, %s54
      %s55 = sphi 0, %s52
      %s56 = sphi 0, %s55
      %s72 = sphi 0, %s56
      %s80 = sphi 0, %s82
      %s83 = sphi 0, %s80
      %s84 = sphi 0, %s83
      %s100 = sphi 0, %s84
      %s108 = sphi 0, %s110
      %s111 = sphi 0, %s108
      %s112 = sphi 0, %s111
      %s128 = sphi 0, %s112
      %s132 = sphi 0, %s132
      %s134 = sphi 0, %s132
      %s135 = sphi 0, %s134
      %s149 = sphi 0, %s135
      %s153 = sphi 0, %s153
      %s155 = sphi 0, %s153
      %s156 = sphi 0, %s155
      %s170 = sphi 0, %s156
      %s178 = sphi 0, %s180
      %s181 = sphi 0, %s178
      %s182 = sphi 0, %s181
      %s198 = sphi 0, %s182
    $region4: #{tpu_custom_call.1} parent=1 // loop_header_branch
      %24 = sbr.rel (%p22) target = $region8
    $region5: #{tpu_custom_call.1} parent=1 // loop_body
      %s26 = ssub.s32 %s21, 1
      %s27 = ssub.s32 %s21, 2
      %s37 = sadd.s32 1, %s30
      %p38 = scmp.ge.s32.totalorder %s37, 1
      %s39 = scalar_select %p38, 0, %s37
      %s40 = sadd.s32 1, %s29
      %s41 = scalar_select %p38, %s40, %s29
      %p42 = scmp.ge.s32.totalorder %s41, 1
      %s43 = scalar_select %p42, 0, %s41
      %s44 = sadd.s32 1, %s28
      %s45 = scalar_select %p42, %s44, %s28
      %p46 = scmp.ge.s32.totalorder %s45, 2
      %s47 = scalar_select %p46, 0, %s45
      %s48 = ssub.s32 %s28, %s47
      %s49 = ssub.s32 %s29, %s43
      %s50 = sor.u32 %s48, %s49
      %p51 = scmp.eq.s32.totalorder %s50, 0
      %s53 = sadd.s32 %s52, 1
      %s54 = scalar_select %p51, %s52, %s53
      %p57 = pneg %p51
      %p58 = scmp.eq.s32.totalorder %s21, 1
      %p59 = por %p57, %p58
      %p60 = scmp.ne.s32.totalorder %s52, %s55
      %p61 = scmp.eq.s32.totalorder %s21, 0
      %p62 = por %p60, %p61
      %p63 = scmp.ne.s32.totalorder %s52, %s55
      %p64 = scmp.eq.s32.totalorder %s26, 1
      %p65 = por %p63, %p64
      %p66 = scmp.ne.s32.totalorder %s55, %s56
      %p67 = scmp.eq.s32.totalorder %s26, 0
      %p68 = por %p66, %p67
      %p69 = scmp.ne.s32.totalorder %s55, %s56
      %p70 = scmp.eq.s32.totalorder %s27, 1
      %p71 = por %p69, %p70
      %p73 = scmp.ne.s32.totalorder %s56, %s72
      %p74 = scmp.eq.s32.totalorder %s27, 0
      %p75 = por %p73, %p74
      %s76 = ssub.s32 %s28, %s47
      %s77 = ssub.s32 %s30, %s39
      %s78 = sor.u32 %s76, %s77
      %p79 = scmp.eq.s32.totalorder %s78, 0
      %s81 = sadd.s32 %s80, 1
      %s82 = scalar_select %p79, %s80, %s81
      %p85 = pneg %p79
      %p86 = scmp.eq.s32.totalorder %s21, 1
      %p87 = por %p85, %p86
      %p88 = scmp.ne.s32.totalorder %s80, %s83
      %p89 = scmp.eq.s32.totalorder %s21, 0
      %p90 = por %p88, %p89
      %p91 = scmp.ne.s32.totalorder %s80, %s83
      %p92 = scmp.eq.s32.totalorder %s26, 1
      %p93 = por %p91, %p92
      %p94 = scmp.ne.s32.totalorder %s83, %s84
      %p95 = scmp.eq.s32.totalorder %s26, 0
      %p96 = por %p94, %p95
      %p97 = scmp.ne.s32.totalorder %s83, %s84
      %p98 = scmp.eq.s32.totalorder %s27, 1
      %p99 = por %p97, %p98
      %p101 = scmp.ne.s32.totalorder %s84, %s100
      %p102 = scmp.eq.s32.totalorder %s27, 0
      %p103 = por %p101, %p102
      %s104 = ssub.s32 %s28, %s47
      %s105 = ssub.s32 %s30, %s39
      %s106 = sor.u32 %s104, %s105
      %p107 = scmp.eq.s32.totalorder %s106, 0
      %s109 = sadd.s32 %s108, 1
      %s110 = scalar_select %p107, %s108, %s109
      %p113 = pneg %p107
      %p114 = scmp.eq.s32.totalorder %s21, 1
      %p115 = por %p113, %p114
      %p116 = scmp.ne.s32.totalorder %s108, %s111
      %p117 = scmp.eq.s32.totalorder %s21, 0
      %p118 = por %p116, %p117
      %p119 = scmp.ne.s32.totalorder %s108, %s111
      %p120 = scmp.eq.s32.totalorder %s26, 1
      %p121 = por %p119, %p120
      %p122 = scmp.ne.s32.totalorder %s111, %s112
      %p123 = scmp.eq.s32.totalorder %s26, 0
      %p124 = por %p122, %p123
      %p125 = scmp.ne.s32.totalorder %s111, %s112
      %p126 = scmp.eq.s32.totalorder %s27, 1
      %p127 = por %p125, %p126
      %p129 = scmp.ne.s32.totalorder %s112, %s128
      %p130 = scmp.eq.s32.totalorder %s27, 0
      %p131 = por %p129, %p130
      %s133 = sadd.s32 %s132, 1
      %p136 = scmp.eq.s32.totalorder %s21, 1
      %p137 = scmp.ne.s32.totalorder %s132, %s134
      %p138 = scmp.eq.s32.totalorder %s21, 0
      %p139 = por %p137, %p138
      %p140 = scmp.ne.s32.totalorder %s132, %s134
      %p141 = scmp.eq.s32.totalorder %s26, 1
      %p142 = por %p140, %p141
      %p143 = scmp.ne.s32.totalorder %s134, %s135
      %p144 = scmp.eq.s32.totalorder %s26, 0
      %p145 = por %p143, %p144
      %p146 = scmp.ne.s32.totalorder %s134, %s135
      %p147 = scmp.eq.s32.totalorder %s27, 1
      %p148 = por %p146, %p147
      %p150 = scmp.ne.s32.totalorder %s135, %s149
      %p151 = scmp.eq.s32.totalorder %s27, 0
      %p152 = por %p150, %p151
      %s154 = sadd.s32 %s153, 1
      %p157 = scmp.eq.s32.totalorder %s21, 1
      %p158 = scmp.ne.s32.totalorder %s153, %s155
      %p159 = scmp.eq.s32.totalorder %s21, 0
      %p160 = por %p158, %p159
      %p161 = scmp.ne.s32.totalorder %s153, %s155
      %p162 = scmp.eq.s32.totalorder %s26, 1
      %p163 = por %p161, %p162
      %p164 = scmp.ne.s32.totalorder %s155, %s156
      %p165 = scmp.eq.s32.totalorder %s26, 0
      %p166 = por %p164, %p165
      %p167 = scmp.ne.s32.totalorder %s155, %s156
      %p168 = scmp.eq.s32.totalorder %s27, 1
      %p169 = por %p167, %p168
      %p171 = scmp.ne.s32.totalorder %s156, %s170
      %p172 = scmp.eq.s32.totalorder %s27, 0
      %p173 = por %p171, %p172
      %s174 = ssub.s32 %s28, %s47
      %s175 = ssub.s32 %s29, %s43
      %s176 = sor.u32 %s174, %s175
      %p177 = scmp.eq.s32.totalorder %s176, 0
      %s179 = sadd.s32 %s178, 1
      %s180 = scalar_select %p177, %s178, %s179
      %p183 = pneg %p177
      %p184 = scmp.eq.s32.totalorder %s21, 1
      %p185 = por %p183, %p184
      %p186 = scmp.ne.s32.totalorder %s178, %s181
      %p187 = scmp.eq.s32.totalorder %s21, 0
      %p188 = por %p186, %p187
      %p189 = scmp.ne.s32.totalorder %s178, %s181
      %p190 = scmp.eq.s32.totalorder %s26, 1
      %p191 = por %p189, %p190
      %p192 = scmp.ne.s32.totalorder %s181, %s182
      %p193 = scmp.eq.s32.totalorder %s26, 0
      %p194 = por %p192, %p193
      %p195 = scmp.ne.s32.totalorder %s181, %s182
      %p196 = scmp.eq.s32.totalorder %s27, 1
      %p197 = por %p195, %p196
      %p199 = scmp.ne.s32.totalorder %s182, %s198
      %p200 = scmp.eq.s32.totalorder %s27, 0
      %p201 = por %p199, %p200
      %p202 = scmp.le.s32.totalorder 1, %s21
      %p203 = scmp.lt.s32.totalorder %s21, 3
      %p204 = pnand %p202, %p203
      %p205 = pneg %p204
      // Predicated region
      $region9: #{tpu_custom_call.1} parent=5 // pred_check
        _
      $region10: #{tpu_custom_call.1} parent=5 // pred_check_branch
        %207 = sbr.rel (%p204) target = $region12
      $region11: #{tpu_custom_call.1} parent=5 // pred_region
        %s208 = ssub.s32 %s21, 1
        // Predicated region
        $region13: #{tpu_custom_call.1} parent=11 // pred_check
          %p209 = pneg %p145
        $region14: #{tpu_custom_call.1} parent=11 // pred_check_branch
          %211 = sbr.rel (%p209) target = $region16
        $region15: #{tpu_custom_call.1} parent=11 // pred_region
          %s213 = ssub.s32 512, 512
          %214 = vsyncadd [#allocation12], %s213
          %s215 = sshll.u32 [#allocation11], 4
          %s216 = int_to_ptr.vmem [resolvable:$true] %s215
          %221 = dma.hbm_to_vmem [thread:$0]  %s3, 512, %s216, [#allocation12], 128, 128, 8
        $region16: #{tpu_custom_call.1} parent=11 // pred_fallthru
          _
        // Predicated region
        $region17: #{tpu_custom_call.1} parent=11 // pred_check
          %p222 = pneg %p166
        $region18: #{tpu_custom_call.1} parent=11 // pred_check_branch
          %224 = sbr.rel (%p222) target = $region20
        $region19: #{tpu_custom_call.1} parent=11 // pred_region
          %s226 = ssub.s32 16, 16
          %227 = vsyncadd [#allocation12], %s226
          %s229 = sshll.u32 [#allocation13], 4
          %s230 = int_to_ptr.vmem [resolvable:$true] %s229
          %232 = dma.hbm_to_vmem [thread:$0]  %s4, 16, %s230, [#allocation12]
        $region20: #{tpu_custom_call.1} parent=11 // pred_fallthru
          _
      $region12: #{tpu_custom_call.1} parent=5 // pred_fallthru
        _
      %p233 = scmp.lt.s32.totalorder %s21, 2
      // Predicated region
      $region21: #{tpu_custom_call.1} parent=5 // pred_check
        %p234 = pneg %p233
      $region22: #{tpu_custom_call.1} parent=5 // pred_check_branch
        %236 = sbr.rel (%p234) target = $region24
      $region23: #{tpu_custom_call.1} parent=5 // pred_region
        // Predicated region
        $region25: #{tpu_custom_call.1} parent=23 // pred_check
          %p237 = pneg %p62
        $region26: #{tpu_custom_call.1} parent=23 // pred_check_branch
          %239 = sbr.rel (%p237) target = $region28
        $region27: #{tpu_custom_call.1} parent=23 // pred_region
          %s240 = sand.u32 %s52, 1
          %s241 = scalar_lea.sflag [#allocation6], %s240
          %s242 = sand.u32 %s52, 1
          %s243 = smul.addr %s242, 8
          %s244 = scalar_lea.vmem [#allocation5], %s243
          %s246 = ssub.s32 128, 128
          %247 = vsyncadd %s241, %s246
          %s248 = sadd.s32 %s29, %s28
          %s249 = smul.addr %s248, 128
          %s250 = scalar_lea.hbm %s0, %s249
          %s252 = sshll.u32 %s244, 4
          %s253 = int_to_ptr.vmem [resolvable:$true] %s252
          %255 = dma.hbm_to_vmem [thread:$0]  %s250, 128, %s253, %s241
        $region28: #{tpu_custom_call.1} parent=23 // pred_fallthru
          _
        // Predicated region
        $region29: #{tpu_custom_call.1} parent=23 // pred_check
          %p256 = pneg %p90
        $region30: #{tpu_custom_call.1} parent=23 // pred_check_branch
          %258 = sbr.rel (%p256) target = $region32
        $region31: #{tpu_custom_call.1} parent=23 // pred_region
          %s259 = sand.u32 %s21, 1
          %s260 = scalar_lea.sflag [#allocation9], %s259
          %s261 = sand.u32 %s80, 1
          %s262 = smul.addr %s261, 8
          %s263 = scalar_lea.vmem [#allocation8], %s262
          %s265 = ssub.s32 128, 128
          %266 = vsyncadd %s260, %s265
          %s267 = sadd.s32 %s30, %s28
          %s268 = smul.addr %s267, 128
          %s269 = scalar_lea.hbm %s1, %s268
          %s271 = sshll.u32 %s263, 4
          %s272 = int_to_ptr.vmem [resolvable:$true] %s271
          %274 = dma.hbm_to_vmem [thread:$0]  %s269, 128, %s272, %s260
        $region32: #{tpu_custom_call.1} parent=23 // pred_fallthru
          _
        // Predicated region
        $region33: #{tpu_custom_call.1} parent=23 // pred_check
          %p275 = pneg %p118
        $region34: #{tpu_custom_call.1} parent=23 // pred_check_branch
          %277 = sbr.rel (%p275) target = $region36
        $region35: #{tpu_custom_call.1} parent=23 // pred_region
          %s278 = sand.u32 %s21, 1
          %s279 = scalar_lea.sflag [#allocation9], %s278
          %s280 = sand.u32 %s108, 1
          %s281 = smul.addr %s280, 8
          %s282 = scalar_lea.vmem [#allocation10], %s281
          %s284 = ssub.s32 128, 128
          %285 = vsyncadd %s279, %s284
          %s286 = sadd.s32 %s30, %s28
          %s287 = smul.addr %s286, 128
          %s288 = scalar_lea.hbm %s2, %s287
          %s290 = sshll.u32 %s282, 4
          %s291 = int_to_ptr.vmem [resolvable:$true] %s290
          %293 = dma.hbm_to_vmem [thread:$0]  %s288, 128, %s291, %s279
        $region36: #{tpu_custom_call.1} parent=23 // pred_fallthru
          _
      $region24: #{tpu_custom_call.1} parent=5 // pred_fallthru
        _
      %p294 = scmp.le.s32.totalorder 1, %s21
      %p295 = scmp.lt.s32.totalorder %s21, 3
      %p296 = pnand %p294, %p295
      %p297 = pneg %p296
      // Predicated region
      $region37: #{tpu_custom_call.1} parent=5 // pred_check
        _
      $region38: #{tpu_custom_call.1} parent=5 // pred_check_branch
        %299 = sbr.rel (%p296) target = $region40
      $region39: #{tpu_custom_call.1} parent=5 // pred_region
        %s300 = ssub.s32 %s21, 1
        %s301 = sand.u32 %s55, 1
        %s302 = scalar_lea.sflag [#allocation6], %s301
        %s303 = sand.u32 %s55, 1
        %s304 = smul.addr %s303, 8
        %s305 = scalar_lea.vmem [#allocation5], %s304
        // Predicated region
        $region41: #{tpu_custom_call.1} parent=39 // pred_check
          %p306 = pneg %p68
        $region42: #{tpu_custom_call.1} parent=39 // pred_check_branch
          %308 = sbr.rel (%p306) target = $region44
        $region43: #{tpu_custom_call.1} parent=39 // pred_region
          %309 = dma.done %s302, 128
        $region44: #{tpu_custom_call.1} parent=39 // pred_fallthru
          _
        %s310 = sand.u32 %s26, 1
        %s311 = scalar_lea.sflag [#allocation9], %s310
        %s312 = sand.u32 %s83, 1
        %s313 = smul.addr %s312, 8
        %s314 = scalar_lea.vmem [#allocation8], %s313
        // Predicated region
        $region45: #{tpu_custom_call.1} parent=39 // pred_check
          %p315 = pneg %p96
        $region46: #{tpu_custom_call.1} parent=39 // pred_check_branch
          %317 = sbr.rel (%p315) target = $region48
        $region47: #{tpu_custom_call.1} parent=39 // pred_region
          %318 = dma.done %s311, 128
        $region48: #{tpu_custom_call.1} parent=39 // pred_fallthru
          _
        %s319 = sand.u32 %s26, 1
        %s320 = scalar_lea.sflag [#allocation9], %s319
        %s321 = sand.u32 %s111, 1
        %s322 = smul.addr %s321, 8
        %s323 = scalar_lea.vmem [#allocation10], %s322
        // Predicated region
        $region49: #{tpu_custom_call.1} parent=39 // pred_check
          %p324 = pneg %p124
        $region50: #{tpu_custom_call.1} parent=39 // pred_check_branch
          %326 = sbr.rel (%p324) target = $region52
        $region51: #{tpu_custom_call.1} parent=39 // pred_region
          %327 = dma.done %s320, 128
        $region52: #{tpu_custom_call.1} parent=39 // pred_fallthru
          _
        // Predicated region
        $region53: #{tpu_custom_call.1} parent=39 // pred_check
          %p328 = pneg %p145
        $region54: #{tpu_custom_call.1} parent=39 // pred_check_branch
          %330 = sbr.rel (%p328) target = $region56
        $region55: #{tpu_custom_call.1} parent=39 // pred_region
          %331 = dma.done [#allocation12], 512
        $region56: #{tpu_custom_call.1} parent=39 // pred_fallthru
          _
        // Predicated region
        $region57: #{tpu_custom_call.1} parent=39 // pred_check
          %p332 = pneg %p166
        $region58: #{tpu_custom_call.1} parent=39 // pred_check_branch
          %334 = sbr.rel (%p332) target = $region60
        $region59: #{tpu_custom_call.1} parent=39 // pred_region
          %335 = dma.done [#allocation12], 16
        $region60: #{tpu_custom_call.1} parent=39 // pred_fallthru
          _
        %s336 = sand.u32 %s55, 1
        %s337 = scalar_lea.sflag [#allocation6], %s336
        %s338 = sand.u32 %s55, 1
        %s339 = smul.addr %s338, 8
        %s340 = scalar_lea.vmem [#allocation5], %s339
        %p341 = pneg %p68
        %p342 = pneg %p65
        %s343 = sand.u32 %s26, 1
        %s344 = scalar_lea.sflag [#allocation9], %s343
        %s345 = sand.u32 %s83, 1
        %s346 = smul.addr %s345, 8
        %s347 = scalar_lea.vmem [#allocation8], %s346
        %p348 = pneg %p96
        %p349 = pneg %p93
        %s350 = sand.u32 %s26, 1
        %s351 = scalar_lea.sflag [#allocation9], %s350
        %s352 = sand.u32 %s111, 1
        %s353 = smul.addr %s352, 8
        %s354 = scalar_lea.vmem [#allocation10], %s353
        %p355 = pneg %p124
        %p356 = pneg %p121
        %p357 = pneg %p145
        %p358 = pneg %p142
        %p359 = pneg %p166
        %p360 = pneg %p163
        %p361 = pneg %p194
        %p362 = pneg %p191
        %s363 = sand.u32 %s181, 1
        %s364 = scalar_lea.sflag [#allocation7], %s363
        %s365 = sand.u32 %s181, 1
        %s366 = smul.addr %s365, 8
        %s367 = scalar_lea.vmem [#allocation14], %s366
        %p368 = scmp.eq.s32.totalorder %s33, 0
        // Predicated region
        $region61: #{tpu_custom_call.1} parent=39 // pred_check
          %p369 = pneg %p368
        $region62: #{tpu_custom_call.1} parent=39 // pred_check_branch
          %371 = sbr.rel (%p369) target = $region64
        $region63: #{tpu_custom_call.1} parent=39 // pred_region
          %vm372 = vcmask 7168
          %373 = vst.msk [vmem:[#allocation2] sm:$0xff] %vm372, -inf
          %374 = vst.msk [vmem:[#allocation2 + $0x8] sm:$0xff] %vm372, -inf
          %375 = vst.msk [vmem:[#allocation3] sm:$0xff] %vm372, 0.0
          %376 = vst.msk [vmem:[#allocation3 + $0x8] sm:$0xff] %vm372, 0.0
          %vm377 = vcmask 130048
          %378 = vst.msk [vmem:[#allocation4] sm:$0xff] %vm377, 0.0
          %379 = vst.msk [vmem:[#allocation4 + $0x8] sm:$0xff] %vm377, 0.0
        $region64: #{tpu_custom_call.1} parent=39 // pred_fallthru
          _
        %v380 = vld [vmem:[%s305] sm:$0xff]
        %v381 = vld [vmem:[%s314] sm:$0xff]
        %v382 = vld [vmem:[%s323] sm:$0xff]
        %vm383 = vcmask 130048
        %v385 = vsel %vm383, %v380, 0
        %v388 = vsel %vm383, %v381, 0
        %390 = vmatprep.subr.mxu0 0.0
        %391 = vmatpush1.xpose.msra.mxu0 %v388
        %392 = vmatprep.subr.mxu0 0.0
        %393 = vmatpush1.xpose.msra.mxu0 0.0
        %394 = vmatprep.subr.mxu0 0.0
        %395 = vmatpush1.xpose.msra.mxu0 0.0
        %396 = vmatprep.subr.mxu0 0.0
        %397 = vmatpush1.xpose.msra.mxu0 0.0
        %398 = vmatprep.subr.mxu0 0.0
        %399 = vmatpush1.xpose.msra.mxu0 0.0
        %400 = vmatprep.subr.mxu0 0.0
        %401 = vmatpush1.xpose.msra.mxu0 0.0
        %402 = vmatprep.subr.mxu0 0.0
        %403 = vmatpush1.xpose.msra.mxu0 0.0
        %404 = vmatprep.subr.mxu0 0.0
        %405 = vmatpush1.xpose.msra.mxu0 0.0
        %406 = vmatprep.subr.mxu0 0.0
        %407 = vmatpush1.xpose.msra.mxu0 0.0
        %408 = vmatprep.subr.mxu0 0.0
        %409 = vmatpush1.xpose.msra.mxu0 0.0
        %410 = vmatprep.subr.mxu0 0.0
        %411 = vmatpush1.xpose.msra.mxu0 0.0
        %412 = vmatprep.subr.mxu0 0.0
        %413 = vmatpush1.xpose.msra.mxu0 0.0
        %414 = vmatprep.subr.mxu0 0.0
        %415 = vmatpush1.xpose.msra.mxu0 0.0
        %416 = vmatprep.subr.mxu0 0.0
        %417 = vmatpush1.xpose.msra.mxu0 0.0
        %418 = vmatprep.subr.mxu0 0.0
        %419 = vmatpush1.xpose.msra.mxu0 0.0
        %420 = vmatprep.subr.mxu0 0.0
        %421 = vmatpush1.xpose.msra.mxu0 0.0
        %422 = vmatprep.subr.mxu0 0.0
        %423 = vmatpush1.xpose.msra.mxu0 0.0
        %424 = vmatprep.subr.mxu0 0.0
        %425 = vmatpush1.xpose.msra.mxu0 0.0
        %426 = vmatprep.subr.mxu0 0.0
        %427 = vmatpush1.xpose.msra.mxu0 0.0
        %428 = vmatprep.subr.mxu0 0.0
        %429 = vmatpush1.xpose.msra.mxu0 0.0
        %430 = vmatprep.subr.mxu0 0.0
        %431 = vmatpush1.xpose.msra.mxu0 0.0
        %432 = vmatprep.subr.mxu0 0.0
        %433 = vmatpush1.xpose.msra.mxu0 0.0
        %434 = vmatprep.subr.mxu0 0.0
        %435 = vmatpush1.xpose.msra.mxu0 0.0
        %436 = vmatprep.subr.mxu0 0.0
        %437 = vmatpush1.xpose.msra.mxu0 0.0
        %438 = vmatprep.subr.mxu0 0.0
        %439 = vmatpush1.xpose.msra.mxu0 0.0
        %440 = vmatprep.subr.mxu0 0.0
        %441 = vmatpush1.xpose.msra.mxu0 0.0
        %442 = vmatprep.subr.mxu0 0.0
        %443 = vmatpush1.xpose.msra.mxu0 0.0
        %444 = vmatprep.subr.mxu0 0.0
        %445 = vmatpush1.xpose.msra.mxu0 0.0
        %446 = vmatprep.subr.mxu0 0.0
        %447 = vmatpush1.xpose.msra.mxu0 0.0
        %448 = vmatprep.subr.mxu0 0.0
        %449 = vmatpush1.xpose.msra.mxu0 0.0
        %450 = vmatprep.subr.mxu0 0.0
        %451 = vmatpush1.xpose.msra.mxu0 0.0
        %452 = vmatprep.subr.mxu0 0.0
        %453 = vmatpush1.xpose.msra.mxu0 0.0
        %454 = vmatprep.mubr.f32.mxu0 0.0
        %455 = vmatmul.mubr.f32.gmra.mrb[0].mxu0 %v385
        %v456 = vpop.f32.mrb[0].mxu0
        %v457 = vadd.f32 0.0, %v456
        %v458 = vpop.f32.mrb[0].mxu0
        %459 = vdwg.mxu0
        %v460 = vmul.f32 %v457, 0.25
        %v461 = vld [vmem:[#allocation2] sm:$0xff]
        %vm462 = vcmask 64512
        %v463 = vsel %vm462, %v460, -inf
        %464 = vmax.xlane.f32.xlu0 %v463
        %v465 = vpop.xlane.xlu0 %464
        %v466 = vmax.f32 %v461, %v465
        %v467 = vsub.f32 %v461, %v466
        %v468 = vmul.f32 %v467, 1.442695
        %v469 = vpow.pop %v468
        %471 = vset.pattern.permute.xlu0 0
        %472 = vperm.xlu0 %471, %v466
        %v473 = vpop.permute.xlu0 %472
        %v475 = vsub.f32 %v460, %v473
        %v476 = vmul.f32 %v475, 1.442695
        %v477 = vpow.pop %v476
        %v478 = vld [vmem:[#allocation3] sm:$0xff]
        %v479 = vmul.f32 %v469, %v478
        %v480 = vsel %vm462, %v477, 0.0
        %481 = vadd.xlane.f32.xlu0 %v480
        %v482 = vpop.xlane.xlu0 %481
        %v483 = vadd.f32 %v479, %v482
        %vm484 = vcmask 7168
        %485 = vst.msk [vmem:[#allocation3] sm:$0xff] %vm484, %v483
        %v486 = vld [vmem:[#allocation4] sm:$0xff]
        %488 = vset.pattern.permute.xlu0 0
        %489 = vperm.xlu0 %488, %v469
        %v490 = vpop.permute.xlu0 %489
        %v492 = vmul.f32 %v490, %v486
        %v494 = vsel %vm462, %v477, 0
        %496 = vmatprep.subr.mxu0 0.0
        %497 = vmatpush1.msra.mxu0 %v382
        %498 = vmatprep.subr.mxu0 0.0
        %499 = vmatpush1.msra.mxu0 0.0
        %500 = vmatprep.subr.mxu0 0.0
        %501 = vmatpush1.msra.mxu0 0.0
        %502 = vmatprep.subr.mxu0 0.0
        %503 = vmatpush1.msra.mxu0 0.0
        %504 = vmatprep.subr.mxu0 0.0
        %505 = vmatpush1.msra.mxu0 0.0
        %506 = vmatprep.subr.mxu0 0.0
        %507 = vmatpush1.msra.mxu0 0.0
        %508 = vmatprep.subr.mxu0 0.0
        %509 = vmatpush1.msra.mxu0 0.0
        %510 = vmatprep.subr.mxu0 0.0
        %511 = vmatpush1.msra.mxu0 0.0
        %512 = vmatprep.subr.mxu0 0.0
        %513 = vmatpush1.msra.mxu0 0.0
        %514 = vmatprep.subr.mxu0 0.0
        %515 = vmatpush1.msra.mxu0 0.0
        %516 = vmatprep.subr.mxu0 0.0
        %517 = vmatpush1.msra.mxu0 0.0
        %518 = vmatprep.subr.mxu0 0.0
        %519 = vmatpush1.msra.mxu0 0.0
        %520 = vmatprep.subr.mxu0 0.0
        %521 = vmatpush1.msra.mxu0 0.0
        %522 = vmatprep.subr.mxu0 0.0
        %523 = vmatpush1.msra.mxu0 0.0
        %524 = vmatprep.subr.mxu0 0.0
        %525 = vmatpush1.msra.mxu0 0.0
        %526 = vmatprep.subr.mxu0 0.0
        %527 = vmatpush1.msra.mxu0 0.0
        %528 = vmatprep.subr.mxu0 0.0
        %529 = vmatpush1.msra.mxu0 0.0
        %530 = vmatprep.subr.mxu0 0.0
        %531 = vmatpush1.msra.mxu0 0.0
        %532 = vmatprep.subr.mxu0 0.0
        %533 = vmatpush1.msra.mxu0 0.0
        %534 = vmatprep.subr.mxu0 0.0
        %535 = vmatpush1.msra.mxu0 0.0
        %536 = vmatprep.subr.mxu0 0.0
        %537 = vmatpush1.msra.mxu0 0.0
        %538 = vmatprep.subr.mxu0 0.0
        %539 = vmatpush1.msra.mxu0 0.0
        %540 = vmatprep.subr.mxu0 0.0
        %541 = vmatpush1.msra.mxu0 0.0
        %542 = vmatprep.subr.mxu0 0.0
        %543 = vmatpush1.msra.mxu0 0.0
        %544 = vmatprep.subr.mxu0 0.0
        %545 = vmatpush1.msra.mxu0 0.0
        %546 = vmatprep.subr.mxu0 0.0
        %547 = vmatpush1.msra.mxu0 0.0
        %548 = vmatprep.subr.mxu0 0.0
        %549 = vmatpush1.msra.mxu0 0.0
        %550 = vmatprep.subr.mxu0 0.0
        %551 = vmatpush1.msra.mxu0 0.0
        %552 = vmatprep.subr.mxu0 0.0
        %553 = vmatpush1.msra.mxu0 0.0
        %554 = vmatprep.subr.mxu0 0.0
        %555 = vmatpush1.msra.mxu0 0.0
        %556 = vmatprep.subr.mxu0 0.0
        %557 = vmatpush1.msra.mxu0 0.0
        %558 = vmatprep.subr.mxu0 0.0
        %559 = vmatpush1.msra.mxu0 0.0
        %560 = vmatprep.mubr.f32.mxu0 0.0
        %561 = vmatmul.mubr.f32.gmra.mrb[0].mxu0 %v494
        %v562 = vpop.f32.mrb[0].mxu0
        %v563 = vadd.f32 0.0, %v562
        %v564 = vpop.f32.mrb[0].mxu0
        %565 = vdwg.mxu0
        %v566 = vadd.f32 %v492, %v563
        %567 = vst.msk [vmem:[#allocation4] sm:$0xff] %vm383, %v566
        %568 = vst.msk [vmem:[#allocation2] sm:$0xff] %vm484, %v466
        %v569 = vld [vmem:[%s305] sm:$0xff]
        %v570 = vld [vmem:[%s314] sm:$0xff]
        %v571 = vld [vmem:[%s323] sm:$0xff]
        %573 = vrot.lane.b32.xlu0 %v569, 112
        %v574 = vpop.permute.xlu0 %573
        %576 = vrot.lane.b32.xlu0 %v570, 112
        %v577 = vpop.permute.xlu0 %576
        %v578 = vsel %vm383, %v574, 0
        %v580 = vsel %vm383, %v577, 0
        %582 = vmatprep.subr.mxu0 0.0
        %583 = vmatpush1.xpose.msra.mxu0 %v580
        %584 = vmatprep.subr.mxu0 0.0
        %585 = vmatpush1.xpose.msra.mxu0 0.0
        %586 = vmatprep.subr.mxu0 0.0
        %587 = vmatpush1.xpose.msra.mxu0 0.0
        %588 = vmatprep.subr.mxu0 0.0
        %589 = vmatpush1.xpose.msra.mxu0 0.0
        %590 = vmatprep.subr.mxu0 0.0
        %591 = vmatpush1.xpose.msra.mxu0 0.0
        %592 = vmatprep.subr.mxu0 0.0
        %593 = vmatpush1.xpose.msra.mxu0 0.0
        %594 = vmatprep.subr.mxu0 0.0
        %595 = vmatpush1.xpose.msra.mxu0 0.0
        %596 = vmatprep.subr.mxu0 0.0
        %597 = vmatpush1.xpose.msra.mxu0 0.0
        %598 = vmatprep.subr.mxu0 0.0
        %599 = vmatpush1.xpose.msra.mxu0 0.0
        %600 = vmatprep.subr.mxu0 0.0
        %601 = vmatpush1.xpose.msra.mxu0 0.0
        %602 = vmatprep.subr.mxu0 0.0
        %603 = vmatpush1.xpose.msra.mxu0 0.0
        %604 = vmatprep.subr.mxu0 0.0
        %605 = vmatpush1.xpose.msra.mxu0 0.0
        %606 = vmatprep.subr.mxu0 0.0
        %607 = vmatpush1.xpose.msra.mxu0 0.0
        %608 = vmatprep.subr.mxu0 0.0
        %609 = vmatpush1.xpose.msra.mxu0 0.0
        %610 = vmatprep.subr.mxu0 0.0
        %611 = vmatpush1.xpose.msra.mxu0 0.0
        %612 = vmatprep.subr.mxu0 0.0
        %613 = vmatpush1.xpose.msra.mxu0 0.0
        %614 = vmatprep.subr.mxu0 0.0
        %615 = vmatpush1.xpose.msra.mxu0 0.0
        %616 = vmatprep.subr.mxu0 0.0
        %617 = vmatpush1.xpose.msra.mxu0 0.0
        %618 = vmatprep.subr.mxu0 0.0
        %619 = vmatpush1.xpose.msra.mxu0 0.0
        %620 = vmatprep.subr.mxu0 0.0
        %621 = vmatpush1.xpose.msra.mxu0 0.0
        %622 = vmatprep.subr.mxu0 0.0
        %623 = vmatpush1.xpose.msra.mxu0 0.0
        %624 = vmatprep.subr.mxu0 0.0
        %625 = vmatpush1.xpose.msra.mxu0 0.0
        %626 = vmatprep.subr.mxu0 0.0
        %627 = vmatpush1.xpose.msra.mxu0 0.0
        %628 = vmatprep.subr.mxu0 0.0
        %629 = vmatpush1.xpose.msra.mxu0 0.0
        %630 = vmatprep.subr.mxu0 0.0
        %631 = vmatpush1.xpose.msra.mxu0 0.0
        %632 = vmatprep.subr.mxu0 0.0
        %633 = vmatpush1.xpose.msra.mxu0 0.0
        %634 = vmatprep.subr.mxu0 0.0
        %635 = vmatpush1.xpose.msra.mxu0 0.0
        %636 = vmatprep.subr.mxu0 0.0
        %637 = vmatpush1.xpose.msra.mxu0 0.0
        %638 = vmatprep.subr.mxu0 0.0
        %639 = vmatpush1.xpose.msra.mxu0 0.0
        %640 = vmatprep.subr.mxu0 0.0
        %641 = vmatpush1.xpose.msra.mxu0 0.0
        %642 = vmatprep.subr.mxu0 0.0
        %643 = vmatpush1.xpose.msra.mxu0 0.0
        %644 = vmatprep.subr.mxu0 0.0
        %645 = vmatpush1.xpose.msra.mxu0 0.0
        %646 = vmatprep.mubr.f32.mxu0 0.0
        %647 = vmatmul.mubr.f32.gmra.mrb[0].mxu0 %v578
        %v648 = vpop.f32.mrb[0].mxu0
        %v649 = vadd.f32 0.0, %v648
        %v650 = vpop.f32.mrb[0].mxu0
        %651 = vdwg.mxu0
        %v652 = vmul.f32 %v649, 0.25
        %s653 = scalar_lea.vmem [#allocation2], 8
        %v654 = vld [vmem:[%s653] sm:$0xff]
        %v655 = vsel %vm462, %v652, -inf
        %656 = vmax.xlane.f32.xlu0 %v655
        %v657 = vpop.xlane.xlu0 %656
        %v658 = vmax.f32 %v654, %v657
        %v659 = vsub.f32 %v654, %v658
        %v660 = vmul.f32 %v659, 1.442695
        %v661 = vpow.pop %v660
        %663 = vset.pattern.permute.xlu0 0
        %664 = vperm.xlu0 %663, %v658
        %v665 = vpop.permute.xlu0 %664
        %v667 = vsub.f32 %v652, %v665
        %v668 = vmul.f32 %v667, 1.442695
        %v669 = vpow.pop %v668
        %s670 = scalar_lea.vmem [#allocation3], 8
        %v671 = vld [vmem:[%s670] sm:$0xff]
        %v672 = vmul.f32 %v661, %v671
        %v673 = vsel %vm462, %v669, 0.0
        %674 = vadd.xlane.f32.xlu0 %v673
        %v675 = vpop.xlane.xlu0 %674
        %v676 = vadd.f32 %v672, %v675
        %677 = vst.msk [vmem:[%s670] sm:$0xff] %vm484, %v676
        %s678 = scalar_lea.vmem [#allocation4], 8
        %v679 = vld [vmem:[%s678] sm:$0xff]
        %681 = vset.pattern.permute.xlu0 0
        %682 = vperm.xlu0 %681, %v661
        %v683 = vpop.permute.xlu0 %682
        %v685 = vmul.f32 %v683, %v679
        %687 = vrot.lane.b32.xlu0 %v571, 112
        %v688 = vpop.permute.xlu0 %687
        %v691 = vsel %vm462, %v669, 0
        %693 = vmatprep.subr.mxu0 0.0
        %694 = vmatpush1.msra.mxu0 %v688
        %695 = vmatprep.subr.mxu0 0.0
        %696 = vmatpush1.msra.mxu0 0.0
        %697 = vmatprep.subr.mxu0 0.0
        %698 = vmatpush1.msra.mxu0 0.0
        %699 = vmatprep.subr.mxu0 0.0
        %700 = vmatpush1.msra.mxu0 0.0
        %701 = vmatprep.subr.mxu0 0.0
        %702 = vmatpush1.msra.mxu0 0.0
        %703 = vmatprep.subr.mxu0 0.0
        %704 = vmatpush1.msra.mxu0 0.0
        %705 = vmatprep.subr.mxu0 0.0
        %706 = vmatpush1.msra.mxu0 0.0
        %707 = vmatprep.subr.mxu0 0.0
        %708 = vmatpush1.msra.mxu0 0.0
        %709 = vmatprep.subr.mxu0 0.0
        %710 = vmatpush1.msra.mxu0 0.0
        %711 = vmatprep.subr.mxu0 0.0
        %712 = vmatpush1.msra.mxu0 0.0
        %713 = vmatprep.subr.mxu0 0.0
        %714 = vmatpush1.msra.mxu0 0.0
        %715 = vmatprep.subr.mxu0 0.0
        %716 = vmatpush1.msra.mxu0 0.0
        %717 = vmatprep.subr.mxu0 0.0
        %718 = vmatpush1.msra.mxu0 0.0
        %719 = vmatprep.subr.mxu0 0.0
        %720 = vmatpush1.msra.mxu0 0.0
        %721 = vmatprep.subr.mxu0 0.0
        %722 = vmatpush1.msra.mxu0 0.0
        %723 = vmatprep.subr.mxu0 0.0
        %724 = vmatpush1.msra.mxu0 0.0
        %725 = vmatprep.subr.mxu0 0.0
        %726 = vmatpush1.msra.mxu0 0.0
        %727 = vmatprep.subr.mxu0 0.0
        %728 = vmatpush1.msra.mxu0 0.0
        %729 = vmatprep.subr.mxu0 0.0
        %730 = vmatpush1.msra.mxu0 0.0
        %731 = vmatprep.subr.mxu0 0.0
        %732 = vmatpush1.msra.mxu0 0.0
        %733 = vmatprep.subr.mxu0 0.0
        %734 = vmatpush1.msra.mxu0 0.0
        %735 = vmatprep.subr.mxu0 0.0
        %736 = vmatpush1.msra.mxu0 0.0
        %737 = vmatprep.subr.mxu0 0.0
        %738 = vmatpush1.msra.mxu0 0.0
        %739 = vmatprep.subr.mxu0 0.0
        %740 = vmatpush1.msra.mxu0 0.0
        %741 = vmatprep.subr.mxu0 0.0
        %742 = vmatpush1.msra.mxu0 0.0
        %743 = vmatprep.subr.mxu0 0.0
        %744 = vmatpush1.msra.mxu0 0.0
        %745 = vmatprep.subr.mxu0 0.0
        %746 = vmatpush1.msra.mxu0 0.0
        %747 = vmatprep.subr.mxu0 0.0
        %748 = vmatpush1.msra.mxu0 0.0
        %749 = vmatprep.subr.mxu0 0.0
        %750 = vmatpush1.msra.mxu0 0.0
        %751 = vmatprep.subr.mxu0 0.0
        %752 = vmatpush1.msra.mxu0 0.0
        %753 = vmatprep.subr.mxu0 0.0
        %754 = vmatpush1.msra.mxu0 0.0
        %755 = vmatprep.subr.mxu0 0.0
        %756 = vmatpush1.msra.mxu0 0.0
        %757 = vmatprep.mubr.f32.mxu0 0.0
        %758 = vmatmul.mubr.f32.gmra.mrb[0].mxu0 %v691
        %v759 = vpop.f32.mrb[0].mxu0
        %v760 = vadd.f32 0.0, %v759
        %v761 = vpop.f32.mrb[0].mxu0
        %762 = vdwg.mxu0
        %v763 = vadd.f32 %v685, %v760
        %764 = vst.msk [vmem:[%s678] sm:$0xff] %vm383, %v763
        %765 = vst.msk [vmem:[%s653] sm:$0xff] %vm484, %v658
        // Predicated region
        $region65: #{tpu_custom_call.1} parent=39 // pred_check
          %p766 = pneg %p368
        $region66: #{tpu_custom_call.1} parent=39 // pred_check_branch
          %768 = sbr.rel (%p766) target = $region68
        $region67: #{tpu_custom_call.1} parent=39 // pred_region
          %v769 = vld [vmem:[#allocation13] sm:$0x1]
          %v771 = vlaneseq
          %v772 = vshrl.u32 %v771, 7
          %v773 = vsub.s32 0, %v772
          %v774 = vrot.slane %v769, %v773
          %v776 = vadd.f32 %v774, 0.0
          %v777 = vld [vmem:[#allocation3] sm:$0xff]
          %v778 = vrcp.pop %v777
          %v779 = vld [vmem:[#allocation4] sm:$0xff]
          %781 = vset.pattern.permute.xlu0 0
          %782 = vperm.xlu0 %781, %v778
          %v783 = vpop.permute.xlu0 %782
          %v785 = vmul.f32 %v779, %v783
          %v786 = vld [vmem:[#allocation11] sm:$0xff]
          %v787 = vld [vmem:[#allocation11 + $0x8] sm:$0xff]
          %v789 = vsel %vm383, %v785, 0
          %791 = vmatprep.subr.mxu0 0.0
          %792 = vmatpush1.msra.mxu0 %v786
          %793 = vmatprep.subr.mxu0 0.0
          %794 = vmatpush1.msra.mxu0 %v787
          %795 = vmatprep.subr.mxu0 0.0
          %796 = vmatpush1.msra.mxu0 0.0
          %797 = vmatprep.subr.mxu0 0.0
          %798 = vmatpush1.msra.mxu0 0.0
          %799 = vmatprep.subr.mxu0 0.0
          %800 = vmatpush1.msra.mxu0 0.0
          %801 = vmatprep.subr.mxu0 0.0
          %802 = vmatpush1.msra.mxu0 0.0
          %803 = vmatprep.subr.mxu0 0.0
          %804 = vmatpush1.msra.mxu0 0.0
          %805 = vmatprep.subr.mxu0 0.0
          %806 = vmatpush1.msra.mxu0 0.0
          %807 = vmatprep.subr.mxu0 0.0
          %808 = vmatpush1.msra.mxu0 0.0
          %809 = vmatprep.subr.mxu0 0.0
          %810 = vmatpush1.msra.mxu0 0.0
          %811 = vmatprep.subr.mxu0 0.0
          %812 = vmatpush1.msra.mxu0 0.0
          %813 = vmatprep.subr.mxu0 0.0
          %814 = vmatpush1.msra.mxu0 0.0
          %815 = vmatprep.subr.mxu0 0.0
          %816 = vmatpush1.msra.mxu0 0.0
          %817 = vmatprep.subr.mxu0 0.0
          %818 = vmatpush1.msra.mxu0 0.0
          %819 = vmatprep.subr.mxu0 0.0
          %820 = vmatpush1.msra.mxu0 0.0
          %821 = vmatprep.subr.mxu0 0.0
          %822 = vmatpush1.msra.mxu0 0.0
          %823 = vmatprep.subr.mxu0 0.0
          %824 = vmatpush1.msra.mxu0 0.0
          %825 = vmatprep.subr.mxu0 0.0
          %826 = vmatpush1.msra.mxu0 0.0
          %827 = vmatprep.subr.mxu0 0.0
          %828 = vmatpush1.msra.mxu0 0.0
          %829 = vmatprep.subr.mxu0 0.0
          %830 = vmatpush1.msra.mxu0 0.0
          %831 = vmatprep.subr.mxu0 0.0
          %832 = vmatpush1.msra.mxu0 0.0
          %833 = vmatprep.subr.mxu0 0.0
          %834 = vmatpush1.msra.mxu0 0.0
          %835 = vmatprep.subr.mxu0 0.0
          %836 = vmatpush1.msra.mxu0 0.0
          %837 = vmatprep.subr.mxu0 0.0
          %838 = vmatpush1.msra.mxu0 0.0
          %839 = vmatprep.subr.mxu0 0.0
          %840 = vmatpush1.msra.mxu0 0.0
          %841 = vmatprep.subr.mxu0 0.0
          %842 = vmatpush1.msra.mxu0 0.0
          %843 = vmatprep.subr.mxu0 0.0
          %844 = vmatpush1.msra.mxu0 0.0
          %845 = vmatprep.subr.mxu0 0.0
          %846 = vmatpush1.msra.mxu0 0.0
          %847 = vmatprep.subr.mxu0 0.0
          %848 = vmatpush1.msra.mxu0 0.0
          %849 = vmatprep.subr.mxu0 0.0
          %850 = vmatpush1.msra.mxu0 0.0
          %851 = vmatprep.subr.mxu0 0.0
          %852 = vmatpush1.msra.mxu0 0.0
          %853 = vmatprep.subr.mxu0 0.0
          %854 = vmatpush1.msra.mxu0 0.0
          %855 = vmatprep.mubr.f32.mxu0 0.0
          %856 = vmatmul.mubr.f32.gmra.mrb[0].mxu0 %v789
          %v857 = vpop.f32.mrb[0].mxu0
          %v858 = vadd.f32 0.0, %v857
          %v859 = vpop.f32.mrb[0].mxu0
          %860 = vdwg.mxu0
          %v861 = vadd.f32 %v776, %v858
          %v862 = vld [vmem:[%s670] sm:$0xff]
          %v863 = vrcp.pop %v862
          %v864 = vld [vmem:[%s678] sm:$0xff]
          %866 = vset.pattern.permute.xlu0 0
          %867 = vperm.xlu0 %866, %v863
          %v868 = vpop.permute.xlu0 %867
          %v870 = vmul.f32 %v864, %v868
          %v871 = vld [vmem:[#allocation11 + $0x10] sm:$0xff]
          %v872 = vld [vmem:[#allocation11 + $0x18] sm:$0xff]
          %v874 = vsel %vm383, %v870, 0
          %876 = vmatprep.subr.mxu0 0.0
          %877 = vmatpush1.msra.mxu0 %v871
          %878 = vmatprep.subr.mxu0 0.0
          %879 = vmatpush1.msra.mxu0 %v872
          %880 = vmatprep.subr.mxu0 0.0
          %881 = vmatpush1.msra.mxu0 0.0
          %882 = vmatprep.subr.mxu0 0.0
          %883 = vmatpush1.msra.mxu0 0.0
          %884 = vmatprep.subr.mxu0 0.0
          %885 = vmatpush1.msra.mxu0 0.0
          %886 = vmatprep.subr.mxu0 0.0
          %887 = vmatpush1.msra.mxu0 0.0
          %888 = vmatprep.subr.mxu0 0.0
          %889 = vmatpush1.msra.mxu0 0.0
          %890 = vmatprep.subr.mxu0 0.0
          %891 = vmatpush1.msra.mxu0 0.0
          %892 = vmatprep.subr.mxu0 0.0
          %893 = vmatpush1.msra.mxu0 0.0
          %894 = vmatprep.subr.mxu0 0.0
          %895 = vmatpush1.msra.mxu0 0.0
          %896 = vmatprep.subr.mxu0 0.0
          %897 = vmatpush1.msra.mxu0 0.0
          %898 = vmatprep.subr.mxu0 0.0
          %899 = vmatpush1.msra.mxu0 0.0
          %900 = vmatprep.subr.mxu0 0.0
          %901 = vmatpush1.msra.mxu0 0.0
          %902 = vmatprep.subr.mxu0 0.0
          %903 = vmatpush1.msra.mxu0 0.0
          %904 = vmatprep.subr.mxu0 0.0
          %905 = vmatpush1.msra.mxu0 0.0
          %906 = vmatprep.subr.mxu0 0.0
          %907 = vmatpush1.msra.mxu0 0.0
          %908 = vmatprep.subr.mxu0 0.0
          %909 = vmatpush1.msra.mxu0 0.0
          %910 = vmatprep.subr.mxu0 0.0
          %911 = vmatpush1.msra.mxu0 0.0
          %912 = vmatprep.subr.mxu0 0.0
          %913 = vmatpush1.msra.mxu0 0.0
          %914 = vmatprep.subr.mxu0 0.0
          %915 = vmatpush1.msra.mxu0 0.0
          %916 = vmatprep.subr.mxu0 0.0
          %917 = vmatpush1.msra.mxu0 0.0
          %918 = vmatprep.subr.mxu0 0.0
          %919 = vmatpush1.msra.mxu0 0.0
          %920 = vmatprep.subr.mxu0 0.0
          %921 = vmatpush1.msra.mxu0 0.0
          %922 = vmatprep.subr.mxu0 0.0
          %923 = vmatpush1.msra.mxu0 0.0
          %924 = vmatprep.subr.mxu0 0.0
          %925 = vmatpush1.msra.mxu0 0.0
          %926 = vmatprep.subr.mxu0 0.0
          %927 = vmatpush1.msra.mxu0 0.0
          %928 = vmatprep.subr.mxu0 0.0
          %929 = vmatpush1.msra.mxu0 0.0
          %930 = vmatprep.subr.mxu0 0.0
          %931 = vmatpush1.msra.mxu0 0.0
          %932 = vmatprep.subr.mxu0 0.0
          %933 = vmatpush1.msra.mxu0 0.0
          %934 = vmatprep.subr.mxu0 0.0
          %935 = vmatpush1.msra.mxu0 0.0
          %936 = vmatprep.subr.mxu0 0.0
          %937 = vmatpush1.msra.mxu0 0.0
          %938 = vmatprep.subr.mxu0 0.0
          %939 = vmatpush1.msra.mxu0 0.0
          %940 = vmatprep.mubr.f32.mxu0 0.0
          %941 = vmatmul.mubr.f32.gmra.mrb[0].mxu0 %v874
          %v942 = vpop.f32.mrb[0].mxu0
          %v943 = vadd.f32 0.0, %v942
          %v944 = vpop.f32.mrb[0].mxu0
          %945 = vdwg.mxu0
          %v946 = vadd.f32 %v861, %v943
          %vm947 = vcmask 261120
          %948 = vst.msk [vmem:[%s367] sm:$0xff] %vm947, %v946
        $region68: #{tpu_custom_call.1} parent=39 // pred_fallthru
          _
        %s949 = sand.u32 %s181, 1
        %s950 = scalar_lea.sflag [#allocation7], %s949
        %s951 = sand.u32 %s181, 1
        %s952 = smul.addr %s951, 8
        %s953 = scalar_lea.vmem [#allocation14], %s952
        // Predicated region
        $region69: #{tpu_custom_call.1} parent=39 // pred_check
          %p954 = pneg %p191
        $region70: #{tpu_custom_call.1} parent=39 // pred_check_branch
          %956 = sbr.rel (%p954) target = $region72
        $region71: #{tpu_custom_call.1} parent=39 // pred_region
          %s958 = ssub.s32 128, 128
          %959 = vsyncadd %s950, %s958
          %s960 = sadd.s32 %s32, %s31
          %s961 = smul.addr %s960, 128
          %s962 = scalar_lea.hbm %s5, %s961
          %s964 = sshll.u32 %s953, 4
          %s965 = int_to_ptr.vmem [resolvable:$true] %s964
          %967 = dma.vmem_to_hbm [thread:$0]  %s965, 128, %s962, %s950
        $region72: #{tpu_custom_call.1} parent=39 // pred_fallthru
          _
      $region40: #{tpu_custom_call.1} parent=5 // pred_fallthru
        _
      %p968 = scmp.le.s32.totalorder 2, %s21
      // Predicated region
      $region73: #{tpu_custom_call.1} parent=5 // pred_check
        %p969 = pneg %p968
      $region74: #{tpu_custom_call.1} parent=5 // pred_check_branch
        %971 = sbr.rel (%p969) target = $region76
      $region75: #{tpu_custom_call.1} parent=5 // pred_region
        %s972 = ssub.s32 %s21, 2
        // Predicated region
        $region77: #{tpu_custom_call.1} parent=75 // pred_check
          %p973 = pneg %p197
        $region78: #{tpu_custom_call.1} parent=75 // pred_check_branch
          %975 = sbr.rel (%p973) target = $region80
        $region79: #{tpu_custom_call.1} parent=75 // pred_region
          %s976 = sand.u32 %s182, 1
          %s977 = scalar_lea.sflag [#allocation7], %s976
          %s978 = sand.u32 %s182, 1
          %s979 = smul.addr %s978, 8
          %s980 = scalar_lea.vmem [#allocation14], %s979
          %981 = dma.done %s977, 128
        $region80: #{tpu_custom_call.1} parent=75 // pred_fallthru
          _
      $region76: #{tpu_custom_call.1} parent=5 // pred_fallthru
        _
    $region6: #{tpu_custom_call.1} parent=1 // loop_footer
      %s25 = sadd.s32 1, %s21
    $region7: #{tpu_custom_call.1} parent=1 // loop_footer_branch
      %20 = sbr.rel target = $region3
    $region8: #{tpu_custom_call.1} parent=1 // loop_exit
      _
    %982 = vsyncpa [#allocation6], 1
    %s983 = scalar_lea.sflag [#allocation6], 1
    %984 = vsyncpa %s983, 1
    %985 = vsyncpa [#allocation9], 1
    %s986 = scalar_lea.sflag [#allocation9], 1
    %987 = vsyncpa %s986, 1
    %988 = vsyncpa [#allocation12], 1
    %989 = vsyncpa [#allocation7], 1
    %s990 = scalar_lea.sflag [#allocation7], 1
    %991 = vsyncpa %s990, 1

</llo_original>
